<compile_context>
chip_gen: v6e
topology: v6e:2x2x1
jax: 0.10.0
libtpu: 0.0.40
codegen_flags: <defaults>
</compile_context>

<pallas_src>
import jax
import jax.numpy as jnp
from jax.experimental import pallas as pl
from jax.experimental.pallas import tpu as pltpu


def _twin_q_kernel(s_ref, a_ref, w1s_ref, w1a_ref, w2_ref, w3_ref, b_ref,
                   o_ref):
    """One batch tile of the fused twin-Q MLP.

    s_ref   : (TB, Ds)               state tile
    a_ref   : (TB, Da)               action tile
    w1s_ref : (Ds, 2*H0)             [W1s_c1 | W1s_c2]
    w1a_ref : (Da, 2*H0)             [W1a_c1 | W1a_c2]
    w2_ref  : (2*H0, 2*H1)           block-diag(W2_c1, W2_c2)
    w3_ref  : (2*H1, 2)              col 0 <- W3_c1, col 1 <- W3_c2
    b_ref   : (1, 2*H0 + 2*H1 + 2)   [b1_c1|b1_c2, b2_c1|b2_c2, b3_c1|b3_c2]
    o_ref   : (TB, 2)                column 0 = q1, column 1 = q2
    """
    h0x2 = w1s_ref.shape[1]
    h1x2 = w2_ref.shape[1]
    b1 = b_ref[:, 0:h0x2]
    b2 = b_ref[:, h0x2:h0x2 + h1x2]
    b3 = b_ref[:, h0x2 + h1x2:]

    # Layer 1: implicit concat(state, action) via two matmuls (no HBM concat).
    h = (jnp.dot(s_ref[...], w1s_ref[...], preferred_element_type=jnp.float32)
         + jnp.dot(a_ref[...], w1a_ref[...], preferred_element_type=jnp.float32)
         + b1)
    h = jnp.maximum(h, 0.0)
    # Layer 2: both critics at once via block-diagonal weight.
    h = jnp.dot(h, w2_ref[...], preferred_element_type=jnp.float32) + b2
    h = jnp.maximum(h, 0.0)
    # Layer 3: (TB, 2*H1) @ (2*H1, 2) -> column 0 = q1, column 1 = q2.
    q = jnp.dot(h, w3_ref[...], preferred_element_type=jnp.float32) + b3
    o_ref[...] = q.astype(o_ref.dtype)


def _pick_batch_tile(batch):
    """Batch tile: whole batch if small, else a sublane-aligned divisor."""
    if batch <= 512:
        return batch
    for tb in (512, 256, 128):
        if batch % tb == 0:
            return tb
    return batch  # fall back to a single full-batch block


def critic_forward(state, action_probs, packed_params):
    """Twin-Q forward pass. Returns (q1, q2), each (B, 1) float32."""
    w1s, w1a, w2bd, w3p, bpack = packed_params
    state = state.astype(jnp.float32)
    action_probs = action_probs.astype(jnp.float32)

    B, Ds = state.shape
    Da = action_probs.shape[1]
    h0x2 = w1s.shape[1]
    h1x2 = w2bd.shape[1]
    tb = _pick_batch_tile(B)
    grid = (pl.cdiv(B, tb),)

    out = pl.pallas_call(
        _twin_q_kernel,
        out_shape=jax.ShapeDtypeStruct((B, 2), jnp.float32),
        grid=grid,
        in_specs=[
            pl.BlockSpec((tb, Ds), lambda i: (i, 0)),               # state tile
            pl.BlockSpec((tb, Da), lambda i: (i, 0)),               # action tile
            pl.BlockSpec((Ds, h0x2), lambda i: (0, 0)),             # W1 state part (resident)
            pl.BlockSpec((Da, h0x2), lambda i: (0, 0)),             # W1 action part (resident)
            pl.BlockSpec((h0x2, h1x2), lambda i: (0, 0)),           # W2 block-diag (resident)
            pl.BlockSpec((h1x2, 2), lambda i: (0, 0)),              # W3 packed (resident)
            pl.BlockSpec((1, bpack.shape[1]), lambda i: (0, 0)),    # all biases, one DMA
        ],
        out_specs=pl.BlockSpec((tb, 2), lambda i: (i, 0)),          # (B, 2): q1|q2
        compiler_params=pltpu.CompilerParams(
            dimension_semantics=("parallel",)),
    )(state, action_probs, w1s, w1a, w2bd, w3p, bpack)

    q1 = out[:, 0:1]
    q2 = out[:, 1:2]
    return q1, q2


def critic_q1(state, action_probs, packed_params):
    """Equivalent of Critic.Q1: just the first Q-network's value."""
    return critic_forward(state, action_probs, packed_params)[0]


def init_critic_params(key, state_dim, action_dim, hidden_layers=(32, 32)):
    """PyTorch-style uniform(+-1/sqrt(fan_in)) init; returns per-critic tuples."""
    D = state_dim + action_dim
    H0, H1 = hidden_layers
    ks = jax.random.split(key, 12)

    def lin(kw, kb, fan_in, fan_out):
        bound = 1.0 / jnp.sqrt(float(fan_in))
        w = jax.random.uniform(kw, (fan_in, fan_out), jnp.float32, -bound, bound)
        b = jax.random.uniform(kb, (1, fan_out), jnp.float32, -bound, bound)
        return w, b

    critic1 = (*lin(ks[0], ks[1], D, H0),
               *lin(ks[2], ks[3], H0, H1),
               *lin(ks[4], ks[5], H1, 1))
    critic2 = (*lin(ks[6], ks[7], D, H0),
               *lin(ks[8], ks[9], H0, H1),
               *lin(ks[10], ks[11], H1, 1))
    return critic1, critic2


def pack_critic_params(critic1, critic2, state_dim):
    """Pack both critics into the fused layout used by the kernel."""
    w1a_, b1a, w2a, b2a, w3a, b3a = critic1
    w1b_, b1b, w2b, b2b, w3b, b3b = critic2
    H0 = w1a_.shape[1]
    H1 = w2a.shape[1]

    # First layer, split by input (state rows vs action rows), critics on cols.
    w1s = jnp.concatenate([w1a_[:state_dim], w1b_[:state_dim]], axis=1)  # (Ds, 2H0)
    w1a = jnp.concatenate([w1a_[state_dim:], w1b_[state_dim:]], axis=1)  # (Da, 2H0)

    # Second layer: exact block-diagonal packing.
    w2bd = jnp.zeros((2 * H0, 2 * H1), jnp.float32)
    w2bd = w2bd.at[:H0, :H1].set(w2a).at[H0:, H1:].set(w2b)

    # Third layer: column 0 <- critic1, column 1 <- critic2.
    w3p = jnp.zeros((2 * H1, 2), jnp.float32)
    w3p = w3p.at[:H1, 0:1].set(w3a).at[H1:, 1:2].set(w3b)

    bpack = jnp.concatenate([b1a, b1b, b2a, b2b, b3a, b3b], axis=1)  # (1, 2H0+2H1+2)
    return (w1s, w1a, w2bd, w3p, bpack)


def critic_forward_ref(state, action_probs, critic1, critic2):
    """Pure-JAX reference of the PyTorch forward."""
    sa = jnp.concatenate([state, action_probs], axis=1)

    def one(p):
        w1, b1, w2, b2, w3, b3 = p
        h = jnp.maximum(sa @ w1 + b1, 0.0)
        h = jnp.maximum(h @ w2 + b2, 0.0)
        return h @ w3 + b3

    return one(critic1), one(critic2)


if __name__ == "__main__":
    key = jax.random.PRNGKey(0)
    k_state, k_action, k_params = jax.random.split(key, 3)

    batch = 2
    state_dim = 8
    action_dim = 4
    hidden_layers = (32, 32)

    state = jax.random.normal(k_state, (batch, state_dim), jnp.float32)
    action_probs = jax.nn.softmax(
        jax.random.normal(k_action, (batch, action_dim), jnp.float32), axis=-1)

    critic1, critic2 = init_critic_params(k_params, state_dim, action_dim,
                                          hidden_layers)
    packed = pack_critic_params(critic1, critic2, state_dim)

    q1, q2 = critic_forward(state, action_probs, packed)
    jax.block_until_ready((q1, q2))

    q1_ref, q2_ref = critic_forward_ref(state, action_probs, critic1, critic2)
    assert q1.shape == (batch, 1) and q2.shape == (batch, 1)
    assert jnp.allclose(q1, q1_ref, atol=1e-5, rtol=1e-5)
    assert jnp.allclose(q2, q2_ref, atol=1e-5, rtol=1e-5)

    # Q1-only path (Critic.Q1) reuses the same fused kernel.
    q1_only = critic_q1(state, action_probs, packed)
    jax.block_until_ready(q1_only)
    assert jnp.allclose(q1_only, q1_ref, atol=1e-5, rtol=1e-5)

    print("KERNEL_OK")
</pallas_src>

<mosaic_0001>
module attributes {stable_mosaic.version = 11 : i64} {
  func.func @_twin_q_kernel(%arg0: i32, %arg1: memref<2x8xf32, #tpu.memory_space<vmem>>, %arg2: memref<2x4xf32, #tpu.memory_space<vmem>>, %arg3: memref<8x64xf32, #tpu.memory_space<vmem>>, %arg4: memref<4x64xf32, #tpu.memory_space<vmem>>, %arg5: memref<64x64xf32, #tpu.memory_space<vmem>>, %arg6: memref<64x2xf32, #tpu.memory_space<vmem>>, %arg7: memref<1x130xf32, #tpu.memory_space<vmem>>, %arg8: memref<2x2xf32, #tpu.memory_space<vmem>>) attributes {dimension_semantics = [#tpu.dimension_semantics<parallel>], iteration_bounds = array<i64: 1>, scalar_prefetch = 0 : i64, scratch_operands = 0 : i64, tpu.core_type = #tpu.core_type<tc>, window_params = [{transform_indices = @transform_0, window_bounds = array<i64: 2, 8>}, {transform_indices = @transform_1, window_bounds = array<i64: 2, 4>}, {pipeline_mode = #tpu.pipeline_mode<synchronous>, transform_indices = @transform_2, window_bounds = array<i64: 8, 64>}, {pipeline_mode = #tpu.pipeline_mode<synchronous>, transform_indices = @transform_3, window_bounds = array<i64: 4, 64>}, {pipeline_mode = #tpu.pipeline_mode<synchronous>, transform_indices = @transform_4, window_bounds = array<i64: 64, 64>}, {pipeline_mode = #tpu.pipeline_mode<synchronous>, transform_indices = @transform_5, window_bounds = array<i64: 64, 2>}, {pipeline_mode = #tpu.pipeline_mode<synchronous>, transform_indices = @transform_6, window_bounds = array<i64: 1, 130>}, {transform_indices = @transform_7, window_bounds = array<i64: 2, 2>}]} {
    %c0 = arith.constant 0 : index
    %c0_0 = arith.constant 0 : index
    %0 = vector.load %arg7[%c0, %c0_0] : memref<1x130xf32, #tpu.memory_space<vmem>>, vector<1x64xf32>
    %c0_1 = arith.constant 0 : index
    %c64 = arith.constant 64 : index
    %1 = vector.load %arg7[%c0_1, %c64] : memref<1x130xf32, #tpu.memory_space<vmem>>, vector<1x64xf32>
    %c0_2 = arith.constant 0 : index
    %c128 = arith.constant 128 : index
    %2 = vector.load %arg7[%c0_2, %c128] : memref<1x130xf32, #tpu.memory_space<vmem>>, vector<1x2xf32>
    %c0_3 = arith.constant 0 : index
    %c0_4 = arith.constant 0 : index
    %3 = vector.load %arg1[%c0_3, %c0_4] : memref<2x8xf32, #tpu.memory_space<vmem>>, vector<2x8xf32>
    %c0_5 = arith.constant 0 : index
    %c0_6 = arith.constant 0 : index
    %4 = vector.load %arg3[%c0_5, %c0_6] : memref<8x64xf32, #tpu.memory_space<vmem>>, vector<8x64xf32>
    %cst = arith.constant dense<0.000000e+00> : vector<2x64xf32>
    %5 = tpu.matmul %3, %4, %cst {dimension_numbers = #tpu.dot_dimension_numbers<[1], [0], [0], [1], [0, 0, 1, 1], [], []>} : vector<2x8xf32>, vector<8x64xf32>, vector<2x64xf32> -> vector<2x64xf32>
    %c0_7 = arith.constant 0 : index
    %c0_8 = arith.constant 0 : index
    %6 = vector.load %arg2[%c0_7, %c0_8] : memref<2x4xf32, #tpu.memory_space<vmem>>, vector<2x4xf32>
    %c0_9 = arith.constant 0 : index
    %c0_10 = arith.constant 0 : index
    %7 = vector.load %arg4[%c0_9, %c0_10] : memref<4x64xf32, #tpu.memory_space<vmem>>, vector<4x64xf32>
    %cst_11 = arith.constant dense<0.000000e+00> : vector<2x64xf32>
    %8 = tpu.matmul %6, %7, %cst_11 {dimension_numbers = #tpu.dot_dimension_numbers<[1], [0], [0], [1], [0, 0, 1, 1], [], []>} : vector<2x4xf32>, vector<4x64xf32>, vector<2x64xf32> -> vector<2x64xf32>
    %9 = arith.addf %5, %8 : vector<2x64xf32>
    %10 = vector.broadcast %0 : vector<1x64xf32> to vector<2x64xf32>
    %11 = arith.addf %9, %10 : vector<2x64xf32>
    %cst_12 = arith.constant 0.000000e+00 : f32
    %12 = vector.broadcast %cst_12 : f32 to vector<2x64xf32>
    %13 = arith.maximumf %11, %12 : vector<2x64xf32>
    %c0_13 = arith.constant 0 : index
    %c0_14 = arith.constant 0 : index
    %14 = vector.load %arg5[%c0_13, %c0_14] : memref<64x64xf32, #tpu.memory_space<vmem>>, vector<64x64xf32>
    %cst_15 = arith.constant dense<0.000000e+00> : vector<2x64xf32>
    %15 = tpu.matmul %13, %14, %cst_15 {dimension_numbers = #tpu.dot_dimension_numbers<[1], [0], [0], [1], [0, 0, 1, 1], [], []>} : vector<2x64xf32>, vector<64x64xf32>, vector<2x64xf32> -> vector<2x64xf32>
    %16 = vector.broadcast %1 : vector<1x64xf32> to vector<2x64xf32>
    %17 = arith.addf %15, %16 : vector<2x64xf32>
    %cst_16 = arith.constant 0.000000e+00 : f32
    %18 = vector.broadcast %cst_16 : f32 to vector<2x64xf32>
    %19 = arith.maximumf %17, %18 : vector<2x64xf32>
    %c0_17 = arith.constant 0 : index
    %c0_18 = arith.constant 0 : index
    %20 = vector.load %arg6[%c0_17, %c0_18] : memref<64x2xf32, #tpu.memory_space<vmem>>, vector<64x2xf32>
    %cst_19 = arith.constant dense<0.000000e+00> : vector<2x2xf32>
    %21 = tpu.matmul %19, %20, %cst_19 {dimension_numbers = #tpu.dot_dimension_numbers<[1], [0], [0], [1], [0, 0, 1, 1], [], []>} : vector<2x64xf32>, vector<64x2xf32>, vector<2x2xf32> -> vector<2x2xf32>
    %22 = vector.broadcast %2 : vector<1x2xf32> to vector<2x2xf32>
    %23 = arith.addf %21, %22 : vector<2x2xf32>
    %c0_20 = arith.constant 0 : index
    %c0_21 = arith.constant 0 : index
    %24 = vector.load %arg8[%c0_20, %c0_21] : memref<2x2xf32, #tpu.memory_space<vmem>>, vector<2x2xf32>
    tpu.vector_store %arg8[%c0_20, %c0_21], %23 {strides = array<i32>} : memref<2x2xf32, #tpu.memory_space<vmem>>, vector<2x2xf32>,
    return
  }
  func.func @transform_0(%arg0: i32) -> (i32, i32) {
    %c0_i32 = arith.constant 0 : i32
    %c0_i32_0 = arith.constant 0 : i32
    return %arg0, %c0_i32 : i32, i32
  }
  func.func @transform_1(%arg0: i32) -> (i32, i32) {
    %c0_i32 = arith.constant 0 : i32
    %c0_i32_0 = arith.constant 0 : i32
    return %arg0, %c0_i32 : i32, i32
  }
  func.func @transform_2(%arg0: i32) -> (i32, i32) {
    %c0_i32 = arith.constant 0 : i32
    %c0_i32_0 = arith.constant 0 : i32
    %c0_i32_1 = arith.constant 0 : i32
    return %c0_i32, %c0_i32_0 : i32, i32
  }
  func.func @transform_3(%arg0: i32) -> (i32, i32) {
    %c0_i32 = arith.constant 0 : i32
    %c0_i32_0 = arith.constant 0 : i32
    %c0_i32_1 = arith.constant 0 : i32
    return %c0_i32, %c0_i32_0 : i32, i32
  }
  func.func @transform_4(%arg0: i32) -> (i32, i32) {
    %c0_i32 = arith.constant 0 : i32
    %c0_i32_0 = arith.constant 0 : i32
    %c0_i32_1 = arith.constant 0 : i32
    return %c0_i32, %c0_i32_0 : i32, i32
  }
  func.func @transform_5(%arg0: i32) -> (i32, i32) {
    %c0_i32 = arith.constant 0 : i32
    %c0_i32_0 = arith.constant 0 : i32
    %c0_i32_1 = arith.constant 0 : i32
    return %c0_i32, %c0_i32_0 : i32, i32
  }
  func.func @transform_6(%arg0: i32) -> (i32, i32) {
    %c0_i32 = arith.constant 0 : i32
    %c0_i32_0 = arith.constant 0 : i32
    %c0_i32_1 = arith.constant 0 : i32
    return %c0_i32, %c0_i32_0 : i32, i32
  }
  func.func @transform_7(%arg0: i32) -> (i32, i32) {
    %c0_i32 = arith.constant 0 : i32
    %c0_i32_0 = arith.constant 0 : i32
    return %arg0, %c0_i32 : i32, i32
  }
}

</mosaic_0001>

<llo_original>
// kernel: tpu_custom_call.1
$region0: #{tpu_custom_call.1}
  #allocation0 [shape = 'u32[]', space=smem, size = 0x4, offset = 0x4, fixed_abs, tag = 'smem constant byte address 0x4 - core index']
  #allocation1 [shape = 'u32[144,128]{1,0:T(1,128)}', space=vmem, size = 0x12000, scoped, tag = 'internal scratch']
  %s0 = inlined_call_operand.hbm [shape: f32[2,8], index: 0, kind: input, shape index: {}]
  %s1 = inlined_call_operand.hbm [shape: f32[2,4], index: 1, kind: input, shape index: {}]
  %s2 = inlined_call_operand.vmem [shape: f32[8,64], index: 2, kind: input, shape index: {}]
  %s3 = inlined_call_operand.hbm [shape: f32[4,64], index: 3, kind: input, shape index: {}]
  %s4 = inlined_call_operand.vmem [shape: f32[64,64], index: 4, kind: input, shape index: {}]
  %s5 = inlined_call_operand.vmem [shape: f32[64,2], index: 5, kind: input, shape index: {}]
  %s6 = inlined_call_operand.vmem [shape: f32[1,130], index: 6, kind: input, shape index: {}]
  %s7 = inlined_call_operand.hbm [shape: f32[2,2], index: 7, kind: output, shape index: {}]
  %s8 = sld [smem:[#allocation0]]
  $region50: #{tpu_custom_call.1} parent=0
    _
  %s10 = ssub.s32 1, %s8
  %s11 = scalar_select 0, %s10, %s8
  $region1: #{tpu_custom_call.1} parent=0
    #allocation2 [shape = 'u8[1024]{0}', space=vmem, size = 0x400, scoped, tag = 'input window, operand 0, single buffered']
    #allocation3 [shape = 's32[1]{0}', space=sflag, size = 0x4, scoped, tag = 'scoped memory for tpu_custom_call.1']
    #allocation4 [shape = 's32[1]{0}', space=sflag, size = 0x4, scoped, tag = 'scoped memory for tpu_custom_call.1']
    #allocation5 [shape = 'u8[1024]{0}', space=vmem, size = 0x400, scoped, tag = 'input window, operand 1, single buffered']
    #allocation6 [shape = 's32[1]{0}', space=sflag, size = 0x4, scoped, tag = 'scoped memory for tpu_custom_call.1']
    #allocation7 [shape = 'u8[2048]{0}', space=vmem, size = 0x800, scoped, tag = 'input window, operand 3, single buffered']
    #allocation8 [shape = 'u8[1024]{0}', space=vmem, size = 0x400, scoped, tag = 'output window, operand 0, single buffered']
    %12 = vsyncpa [#allocation3], 0
    %13 = vsyncpa [#allocation6], 0
    %14 = vsyncpa [#allocation4], 0
    // Predicated region
    $region2: #{tpu_custom_call.1} parent=1 // pred_check
      _
    $region3: #{tpu_custom_call.1} parent=1 // pred_check_branch
      %16 = sbr.rel (0) target = $region5
    $region4: #{tpu_custom_call.1} parent=1 // pred_region
      %s18 = ssub.s32 32, 32
      %19 = vsyncadd [#allocation3], %s18
      %s21 = sshll.u32 [#allocation2], 4
      %s22 = int_to_ptr.vmem [resolvable:$true] %s21
      %24 = dma.hbm_to_vmem [thread:$0]  %s0, 32, %s22, [#allocation3]
    $region5: #{tpu_custom_call.1} parent=1 // pred_fallthru
      _
    // Predicated region
    $region6: #{tpu_custom_call.1} parent=1 // pred_check
      _
    $region7: #{tpu_custom_call.1} parent=1 // pred_check_branch
      %26 = sbr.rel (0) target = $region9
    $region8: #{tpu_custom_call.1} parent=1 // pred_region
      %s28 = ssub.s32 32, 32
      %29 = vsyncadd [#allocation6], %s28
      %s31 = sshll.u32 [#allocation5], 4
      %s32 = int_to_ptr.vmem [resolvable:$true] %s31
      %34 = dma.hbm_to_vmem [thread:$0]  %s1, 32, %s32, [#allocation6]
    $region9: #{tpu_custom_call.1} parent=1 // pred_fallthru
      _
    // Predicated region
    $region10: #{tpu_custom_call.1} parent=1 // pred_check
      _
    $region11: #{tpu_custom_call.1} parent=1 // pred_check_branch
      %36 = sbr.rel (0) target = $region13
    $region12: #{tpu_custom_call.1} parent=1 // pred_region
      _
    $region13: #{tpu_custom_call.1} parent=1 // pred_fallthru
      _
    // Predicated region
    $region14: #{tpu_custom_call.1} parent=1 // pred_check
      _
    $region15: #{tpu_custom_call.1} parent=1 // pred_check_branch
      %38 = sbr.rel (0) target = $region17
    $region16: #{tpu_custom_call.1} parent=1 // pred_region
      %s40 = ssub.s32 64, 64
      %41 = vsyncadd [#allocation6], %s40
      %s43 = sshll.u32 [#allocation7], 4
      %s44 = int_to_ptr.vmem [resolvable:$true] %s43
      %46 = dma.hbm_to_vmem [thread:$0]  %s3, 64, %s44, [#allocation6]
    $region17: #{tpu_custom_call.1} parent=1 // pred_fallthru
      _
    // Predicated region
    $region18: #{tpu_custom_call.1} parent=1 // pred_check
      _
    $region19: #{tpu_custom_call.1} parent=1 // pred_check_branch
      %48 = sbr.rel (0) target = $region21
    $region20: #{tpu_custom_call.1} parent=1 // pred_region
      _
    $region21: #{tpu_custom_call.1} parent=1 // pred_fallthru
      _
    // Predicated region
    $region22: #{tpu_custom_call.1} parent=1 // pred_check
      _
    $region23: #{tpu_custom_call.1} parent=1 // pred_check_branch
      %50 = sbr.rel (0) target = $region25
    $region24: #{tpu_custom_call.1} parent=1 // pred_region
      _
    $region25: #{tpu_custom_call.1} parent=1 // pred_fallthru
      _
    // Predicated region
    $region26: #{tpu_custom_call.1} parent=1 // pred_check
      _
    $region27: #{tpu_custom_call.1} parent=1 // pred_check_branch
      %52 = sbr.rel (0) target = $region29
    $region28: #{tpu_custom_call.1} parent=1 // pred_region
      _
    $region29: #{tpu_custom_call.1} parent=1 // pred_fallthru
      _
    // Predicated region
    $region30: #{tpu_custom_call.1} parent=1 // pred_check
      _
    $region31: #{tpu_custom_call.1} parent=1 // pred_check_branch
      %54 = sbr.rel (0) target = $region33
    $region32: #{tpu_custom_call.1} parent=1 // pred_region
      %55 = dma.done [#allocation3], 32
    $region33: #{tpu_custom_call.1} parent=1 // pred_fallthru
      _
    // Predicated region
    $region34: #{tpu_custom_call.1} parent=1 // pred_check
      _
    $region35: #{tpu_custom_call.1} parent=1 // pred_check_branch
      %57 = sbr.rel (0) target = $region37
    $region36: #{tpu_custom_call.1} parent=1 // pred_region
      %58 = dma.done [#allocation6], 32
    $region37: #{tpu_custom_call.1} parent=1 // pred_fallthru
      _
    // Predicated region
    $region38: #{tpu_custom_call.1} parent=1 // pred_check
      _
    $region39: #{tpu_custom_call.1} parent=1 // pred_check_branch
      %60 = sbr.rel (0) target = $region41
    $region40: #{tpu_custom_call.1} parent=1 // pred_region
      %61 = dma.done [#allocation6], 64
    $region41: #{tpu_custom_call.1} parent=1 // pred_fallthru
      _
    %v62 = vld [vmem:[%s6] sm:$0x1]
    %v63 = vld [vmem:[%s6 + $0x1] sm:$0x1]
    %v64 = vld [vmem:[#allocation2] sm:$0x3]
    %v65 = vld [vmem:[%s2] sm:$0xff]
    %v66 = vld [vmem:[#allocation5] sm:$0x3]
    %v67 = vld [vmem:[#allocation7] sm:$0xf]
    %vm68 = vcmask 31744
    %v70 = vsel %vm68, %v66, 0
    %vm72 = vcmask 1043456
    %v74 = vsel %vm72, %v67, 0
    %76 = vmatprep.subr.mxu0 0.0
    %77 = vmatpush1.msra.mxu0 0.0
    %78 = vmatprep.subr.mxu0 0.0
    %79 = vmatpush1.msra.mxu0 0.0
    %80 = vmatprep.subr.mxu0 0.0
    %81 = vmatpush1.msra.mxu0 0.0
    %82 = vmatprep.subr.mxu0 0.0
    %83 = vmatpush1.msra.mxu0 0.0
    %84 = vmatprep.subr.mxu0 0.0
    %85 = vmatpush1.msra.mxu0 0.0
    %86 = vmatprep.subr.mxu0 0.0
    %87 = vmatpush1.msra.mxu0 0.0
    %88 = vmatprep.subr.mxu0 0.0
    %89 = vmatpush1.msra.mxu0 0.0
    %90 = vmatprep.subr.mxu0 0.0
    %91 = vmatpush1.msra.mxu0 0.0
    %92 = vmatprep.subr.mxu0 0.0
    %93 = vmatpush1.msra.mxu0 0.0
    %94 = vmatprep.subr.mxu0 0.0
    %95 = vmatpush1.msra.mxu0 0.0
    %96 = vmatprep.subr.mxu0 0.0
    %97 = vmatpush1.msra.mxu0 0.0
    %98 = vmatprep.subr.mxu0 0.0
    %99 = vmatpush1.msra.mxu0 0.0
    %100 = vmatprep.subr.mxu0 0.0
    %101 = vmatpush1.msra.mxu0 0.0
    %102 = vmatprep.subr.mxu0 0.0
    %103 = vmatpush1.msra.mxu0 0.0
    %104 = vmatprep.subr.mxu0 0.0
    %105 = vmatpush1.msra.mxu0 0.0
    %106 = vmatprep.subr.mxu0 0.0
    %107 = vmatpush1.msra.mxu0 %v74
    %108 = vmatprep.subr.mxu0 0.0
    %109 = vmatpush2.msra.mxu0 0.0
    %110 = vmatprep.subr.mxu0 0.0
    %111 = vmatpush2.msra.mxu0 0.0
    %112 = vmatprep.subr.mxu0 0.0
    %113 = vmatpush2.msra.mxu0 0.0
    %114 = vmatprep.subr.mxu0 0.0
    %115 = vmatpush2.msra.mxu0 0.0
    %116 = vmatprep.subr.mxu0 0.0
    %117 = vmatpush2.msra.mxu0 0.0
    %118 = vmatprep.subr.mxu0 0.0
    %119 = vmatpush2.msra.mxu0 0.0
    %120 = vmatprep.subr.mxu0 0.0
    %121 = vmatpush2.msra.mxu0 0.0
    %122 = vmatprep.subr.mxu0 0.0
    %123 = vmatpush2.msra.mxu0 0.0
    %124 = vmatprep.subr.mxu0 0.0
    %125 = vmatpush2.msra.mxu0 0.0
    %126 = vmatprep.subr.mxu0 0.0
    %127 = vmatpush2.msra.mxu0 0.0
    %128 = vmatprep.subr.mxu0 0.0
    %129 = vmatpush2.msra.mxu0 0.0
    %130 = vmatprep.subr.mxu0 0.0
    %131 = vmatpush2.msra.mxu0 0.0
    %132 = vmatprep.subr.mxu0 0.0
    %133 = vmatpush2.msra.mxu0 0.0
    %134 = vmatprep.subr.mxu0 0.0
    %135 = vmatpush2.msra.mxu0 0.0
    %136 = vmatprep.subr.mxu0 0.0
    %137 = vmatpush2.msra.mxu0 0.0
    %138 = vmatprep.subr.mxu0 0.0
    %139 = vmatpush2.msra.mxu0 0.0
    %140 = vmatprep.mubr.f32.mxu0 0.0
    %141 = vmatmul.mubr.f32.gmra.mxu0 %v70
    %v142 = vpop.f32.mrf.mxu0
    %v143 = vadd.f32 0.0, %v142
    %v144 = vpop.f32.mrf.mxu0
    %145 = vdwg.mxu0
    %vm146 = vcmask 64512
    %v148 = vsel %vm146, %v64, 0
    %150 = vmatprep.subr.mxu0 0.0
    %151 = vmatpush1.msra.mxu0 0.0
    %152 = vmatprep.subr.mxu0 0.0
    %153 = vmatpush1.msra.mxu0 0.0
    %154 = vmatprep.subr.mxu0 0.0
    %155 = vmatpush1.msra.mxu0 0.0
    %156 = vmatprep.subr.mxu0 0.0
    %157 = vmatpush1.msra.mxu0 0.0
    %158 = vmatprep.subr.mxu0 0.0
    %159 = vmatpush1.msra.mxu0 0.0
    %160 = vmatprep.subr.mxu0 0.0
    %161 = vmatpush1.msra.mxu0 0.0
    %162 = vmatprep.subr.mxu0 0.0
    %163 = vmatpush1.msra.mxu0 0.0
    %164 = vmatprep.subr.mxu0 0.0
    %165 = vmatpush1.msra.mxu0 0.0
    %166 = vmatprep.subr.mxu0 0.0
    %167 = vmatpush1.msra.mxu0 0.0
    %168 = vmatprep.subr.mxu0 0.0
    %169 = vmatpush1.msra.mxu0 0.0
    %170 = vmatprep.subr.mxu0 0.0
    %171 = vmatpush1.msra.mxu0 0.0
    %172 = vmatprep.subr.mxu0 0.0
    %173 = vmatpush1.msra.mxu0 0.0
    %174 = vmatprep.subr.mxu0 0.0
    %175 = vmatpush1.msra.mxu0 0.0
    %176 = vmatprep.subr.mxu0 0.0
    %177 = vmatpush1.msra.mxu0 0.0
    %178 = vmatprep.subr.mxu0 0.0
    %179 = vmatpush1.msra.mxu0 0.0
    %180 = vmatprep.subr.mxu0 0.0
    %181 = vmatpush1.msra.mxu0 %v65
    %182 = vmatprep.subr.mxu0 0.0
    %183 = vmatpush2.msra.mxu0 0.0
    %184 = vmatprep.subr.mxu0 0.0
    %185 = vmatpush2.msra.mxu0 0.0
    %186 = vmatprep.subr.mxu0 0.0
    %187 = vmatpush2.msra.mxu0 0.0
    %188 = vmatprep.subr.mxu0 0.0
    %189 = vmatpush2.msra.mxu0 0.0
    %190 = vmatprep.subr.mxu0 0.0
    %191 = vmatpush2.msra.mxu0 0.0
    %192 = vmatprep.subr.mxu0 0.0
    %193 = vmatpush2.msra.mxu0 0.0
    %194 = vmatprep.subr.mxu0 0.0
    %195 = vmatpush2.msra.mxu0 0.0
    %196 = vmatprep.subr.mxu0 0.0
    %197 = vmatpush2.msra.mxu0 0.0
    %198 = vmatprep.subr.mxu0 0.0
    %199 = vmatpush2.msra.mxu0 0.0
    %200 = vmatprep.subr.mxu0 0.0
    %201 = vmatpush2.msra.mxu0 0.0
    %202 = vmatprep.subr.mxu0 0.0
    %203 = vmatpush2.msra.mxu0 0.0
    %204 = vmatprep.subr.mxu0 0.0
    %205 = vmatpush2.msra.mxu0 0.0
    %206 = vmatprep.subr.mxu0 0.0
    %207 = vmatpush2.msra.mxu0 0.0
    %208 = vmatprep.subr.mxu0 0.0
    %209 = vmatpush2.msra.mxu0 0.0
    %210 = vmatprep.subr.mxu0 0.0
    %211 = vmatpush2.msra.mxu0 0.0
    %212 = vmatprep.subr.mxu0 0.0
    %213 = vmatpush2.msra.mxu0 0.0
    %214 = vmatprep.mubr.f32.mxu0 0.0
    %215 = vmatmul.mubr.f32.gmra.mxu0 %v148
    %v216 = vpop.f32.mrf.mxu0
    %v217 = vadd.f32 %v143, %v216
    %v218 = vpop.f32.mrf.mxu0
    %219 = vdwg.mxu0
    %v221 = vlaneseq
    %v222 = vshrl.u32 %v221, 7
    %v223 = vsub.s32 0, %v222
    %v224 = vrot.slane %v62, %v223
    %v226 = vadd.f32 %v217, %v224
    %v227 = vmax.f32 %v226, 0.0
    %v228 = vld [vmem:[%s4] sm:$0xff]
    %v229 = vld [vmem:[%s4 + $0x8] sm:$0xff]
    %v230 = vld [vmem:[%s4 + $0x10] sm:$0xff]
    %v231 = vld [vmem:[%s4 + $0x18] sm:$0xff]
    %v232 = vld [vmem:[%s4 + $0x20] sm:$0xff]
    %v233 = vld [vmem:[%s4 + $0x28] sm:$0xff]
    %v234 = vld [vmem:[%s4 + $0x30] sm:$0xff]
    %v235 = vld [vmem:[%s4 + $0x38] sm:$0xff]
    %236 = vrot.lane.b32.xlu0 %v224, 64
    %v237 = vpop.permute.xlu0 %236
    %vm239 = vcmask 523264
    %v241 = vsel %vm239, %v227, 0
    %243 = vmatprep.subr.mxu0 0.0
    %244 = vmatpush1.msra.mxu0 0.0
    %245 = vmatprep.subr.mxu0 0.0
    %246 = vmatpush1.msra.mxu0 0.0
    %247 = vmatprep.subr.mxu0 0.0
    %248 = vmatpush1.msra.mxu0 0.0
    %249 = vmatprep.subr.mxu0 0.0
    %250 = vmatpush1.msra.mxu0 0.0
    %251 = vmatprep.subr.mxu0 0.0
    %252 = vmatpush1.msra.mxu0 0.0
    %253 = vmatprep.subr.mxu0 0.0
    %254 = vmatpush1.msra.mxu0 0.0
    %255 = vmatprep.subr.mxu0 0.0
    %256 = vmatpush1.msra.mxu0 0.0
    %257 = vmatprep.subr.mxu0 0.0
    %258 = vmatpush1.msra.mxu0 0.0
    %259 = vmatprep.subr.mxu0 0.0
    %260 = vmatpush1.msra.mxu0 %v235
    %261 = vmatprep.subr.mxu0 0.0
    %262 = vmatpush1.msra.mxu0 %v234
    %263 = vmatprep.subr.mxu0 0.0
    %264 = vmatpush1.msra.mxu0 %v233
    %265 = vmatprep.subr.mxu0 0.0
    %266 = vmatpush1.msra.mxu0 %v232
    %267 = vmatprep.subr.mxu0 0.0
    %268 = vmatpush1.msra.mxu0 %v231
    %269 = vmatprep.subr.mxu0 0.0
    %270 = vmatpush1.msra.mxu0 %v230
    %271 = vmatprep.subr.mxu0 0.0
    %272 = vmatpush1.msra.mxu0 %v229
    %273 = vmatprep.subr.mxu0 0.0
    %274 = vmatpush1.msra.mxu0 %v228
    %275 = vmatprep.subr.mxu0 0.0
    %276 = vmatpush2.msra.mxu0 0.0
    %277 = vmatprep.subr.mxu0 0.0
    %278 = vmatpush2.msra.mxu0 0.0
    %279 = vmatprep.subr.mxu0 0.0
    %280 = vmatpush2.msra.mxu0 0.0
    %281 = vmatprep.subr.mxu0 0.0
    %282 = vmatpush2.msra.mxu0 0.0
    %283 = vmatprep.subr.mxu0 0.0
    %284 = vmatpush2.msra.mxu0 0.0
    %285 = vmatprep.subr.mxu0 0.0
    %286 = vmatpush2.msra.mxu0 0.0
    %287 = vmatprep.subr.mxu0 0.0
    %288 = vmatpush2.msra.mxu0 0.0
    %289 = vmatprep.subr.mxu0 0.0
    %290 = vmatpush2.msra.mxu0 0.0
    %291 = vmatprep.subr.mxu0 0.0
    %292 = vmatpush2.msra.mxu0 0.0
    %293 = vmatprep.subr.mxu0 0.0
    %294 = vmatpush2.msra.mxu0 0.0
    %295 = vmatprep.subr.mxu0 0.0
    %296 = vmatpush2.msra.mxu0 0.0
    %297 = vmatprep.subr.mxu0 0.0
    %298 = vmatpush2.msra.mxu0 0.0
    %299 = vmatprep.subr.mxu0 0.0
    %300 = vmatpush2.msra.mxu0 0.0
    %301 = vmatprep.subr.mxu0 0.0
    %302 = vmatpush2.msra.mxu0 0.0
    %303 = vmatprep.subr.mxu0 0.0
    %304 = vmatpush2.msra.mxu0 0.0
    %305 = vmatprep.subr.mxu0 0.0
    %306 = vmatpush2.msra.mxu0 0.0
    %307 = vmatprep.mubr.f32.mxu0 0.0
    %308 = vmatmul.mubr.f32.gmra.mxu0 %v241
    %v309 = vpop.f32.mrf.mxu0
    %v310 = vadd.f32 %v237, %v309
    %v311 = vpop.f32.mrf.mxu0
    %312 = vdwg.mxu0
    %v313 = vmax.f32 %v310, 0.0
    %v314 = vld [vmem:[%s5] sm:$0xff]
    %v315 = vld [vmem:[%s5 + $0x8] sm:$0xff]
    %v316 = vld [vmem:[%s5 + $0x10] sm:$0xff]
    %v317 = vld [vmem:[%s5 + $0x18] sm:$0xff]
    %v318 = vld [vmem:[%s5 + $0x20] sm:$0xff]
    %v319 = vld [vmem:[%s5 + $0x28] sm:$0xff]
    %v320 = vld [vmem:[%s5 + $0x30] sm:$0xff]
    %v321 = vld [vmem:[%s5 + $0x38] sm:$0xff]
    %v323 = vlaneseq
    %v324 = vshrl.u32 %v323, 7
    %v325 = vsub.s32 0, %v324
    %v326 = vrot.slane %v63, %v325
    %v329 = vsel %vm239, %v313, 0
    %331 = vmatprep.subr.mxu0 0.0
    %332 = vmatpush1.msra.mxu0 0.0
    %333 = vmatprep.subr.mxu0 0.0
    %334 = vmatpush1.msra.mxu0 0.0
    %335 = vmatprep.subr.mxu0 0.0
    %336 = vmatpush1.msra.mxu0 0.0
    %337 = vmatprep.subr.mxu0 0.0
    %338 = vmatpush1.msra.mxu0 0.0
    %339 = vmatprep.subr.mxu0 0.0
    %340 = vmatpush1.msra.mxu0 0.0
    %341 = vmatprep.subr.mxu0 0.0
    %342 = vmatpush1.msra.mxu0 0.0
    %343 = vmatprep.subr.mxu0 0.0
    %344 = vmatpush1.msra.mxu0 0.0
    %345 = vmatprep.subr.mxu0 0.0
    %346 = vmatpush1.msra.mxu0 0.0
    %347 = vmatprep.subr.mxu0 0.0
    %348 = vmatpush1.msra.mxu0 %v321
    %349 = vmatprep.subr.mxu0 0.0
    %350 = vmatpush1.msra.mxu0 %v320
    %351 = vmatprep.subr.mxu0 0.0
    %352 = vmatpush1.msra.mxu0 %v319
    %353 = vmatprep.subr.mxu0 0.0
    %354 = vmatpush1.msra.mxu0 %v318
    %355 = vmatprep.subr.mxu0 0.0
    %356 = vmatpush1.msra.mxu0 %v317
    %357 = vmatprep.subr.mxu0 0.0
    %358 = vmatpush1.msra.mxu0 %v316
    %359 = vmatprep.subr.mxu0 0.0
    %360 = vmatpush1.msra.mxu0 %v315
    %361 = vmatprep.subr.mxu0 0.0
    %362 = vmatpush1.msra.mxu0 %v314
    %363 = vmatprep.subr.mxu0 0.0
    %364 = vmatpush2.msra.mxu0 0.0
    %365 = vmatprep.subr.mxu0 0.0
    %366 = vmatpush2.msra.mxu0 0.0
    %367 = vmatprep.subr.mxu0 0.0
    %368 = vmatpush2.msra.mxu0 0.0
    %369 = vmatprep.subr.mxu0 0.0
    %370 = vmatpush2.msra.mxu0 0.0
    %371 = vmatprep.subr.mxu0 0.0
    %372 = vmatpush2.msra.mxu0 0.0
    %373 = vmatprep.subr.mxu0 0.0
    %374 = vmatpush2.msra.mxu0 0.0
    %375 = vmatprep.subr.mxu0 0.0
    %376 = vmatpush2.msra.mxu0 0.0
    %377 = vmatprep.subr.mxu0 0.0
    %378 = vmatpush2.msra.mxu0 0.0
    %379 = vmatprep.subr.mxu0 0.0
    %380 = vmatpush2.msra.mxu0 0.0
    %381 = vmatprep.subr.mxu0 0.0
    %382 = vmatpush2.msra.mxu0 0.0
    %383 = vmatprep.subr.mxu0 0.0
    %384 = vmatpush2.msra.mxu0 0.0
    %385 = vmatprep.subr.mxu0 0.0
    %386 = vmatpush2.msra.mxu0 0.0
    %387 = vmatprep.subr.mxu0 0.0
    %388 = vmatpush2.msra.mxu0 0.0
    %389 = vmatprep.subr.mxu0 0.0
    %390 = vmatpush2.msra.mxu0 0.0
    %391 = vmatprep.subr.mxu0 0.0
    %392 = vmatpush2.msra.mxu0 0.0
    %393 = vmatprep.subr.mxu0 0.0
    %394 = vmatpush2.msra.mxu0 0.0
    %395 = vmatprep.mubr.f32.mxu0 0.0
    %396 = vmatmul.mubr.f32.gmra.mxu0 %v329
    %v397 = vpop.f32.mrf.mxu0
    %v398 = vadd.f32 %v326, %v397
    %v399 = vpop.f32.mrf.mxu0
    %400 = vdwg.mxu0
    %vm401 = vcmask 9216
    %402 = vst.msk [vmem:[#allocation8] sm:$0x3] %vm401, %v398
    // Predicated region
    $region42: #{tpu_custom_call.1} parent=1 // pred_check
      _
    $region43: #{tpu_custom_call.1} parent=1 // pred_check_branch
      %404 = sbr.rel (0) target = $region45
    $region44: #{tpu_custom_call.1} parent=1 // pred_region
      %s406 = ssub.s32 32, 32
      %407 = vsyncadd [#allocation4], %s406
      %s409 = sshll.u32 [#allocation8], 4
      %s410 = int_to_ptr.vmem [resolvable:$true] %s409
      %412 = dma.vmem_to_hbm [thread:$0]  %s410, 32, %s7, [#allocation4]
    $region45: #{tpu_custom_call.1} parent=1 // pred_fallthru
      _
    // Predicated region
    $region46: #{tpu_custom_call.1} parent=1 // pred_check
      _
    $region47: #{tpu_custom_call.1} parent=1 // pred_check_branch
      %414 = sbr.rel (0) target = $region49
    $region48: #{tpu_custom_call.1} parent=1 // pred_region
      %415 = dma.done [#allocation4], 32
    $region49: #{tpu_custom_call.1} parent=1 // pred_fallthru
      _
    %416 = vsyncpa [#allocation3], 1
    %417 = vsyncpa [#allocation6], 1
    %418 = vsyncpa [#allocation4], 1

</llo_original>
